<compile_context>
chip_gen: v6e
topology: v6e:2x2x1
jax: 0.10.0
libtpu: 0.0.40
codegen_flags: <defaults>
</compile_context>

<pallas_src>
import functools
import math

import jax
import jax.numpy as jnp
from jax.experimental import pallas as pl
from jax.experimental.pallas import tpu as pltpu


def _cdiv(a: int, b: int) -> int:
    return -(-a // b)


def build_positional_table(max_len: int, dim: int) -> jnp.ndarray:
    """Deterministic sinusoidal table, identical to the PyTorch __init__; (max_len, 1, dim)."""
    position = jnp.arange(0, max_len, dtype=jnp.float32)[:, None]               # (max_len, 1)
    div_term = jnp.exp(
        jnp.arange(0, dim, 2, dtype=jnp.float32) * -(math.log(10000.0) / dim))  # (dim/2,)
    angles = position * div_term                                                 # (max_len, dim/2)
    pe = jnp.zeros((max_len, dim), dtype=jnp.float32)
    pe = pe.at[:, 0::2].set(jnp.sin(angles))
    pe = pe.at[:, 1::2].set(jnp.cos(angles))
    return pe[:, None, :]                                                        # (max_len, 1, dim)


# --------------------------------------------------------------------------------------
# Kernels
# --------------------------------------------------------------------------------------

def _prefill_kernel(emb_ref, pe_ref, out_ref, *, scale: float):
    # emb_ref: (TS, TB, D); pe_ref: (TS, 1, D) broadcasts over the batch tile.
    out_ref[...] = (emb_ref[...].astype(jnp.float32) * scale + pe_ref[...]).astype(out_ref.dtype)


def _decode_kernel(step_ref, emb_ref, pe_ref, out_ref, *, scale: float):
    # step_ref is consumed by the BlockSpec index_maps only.
    del step_ref
    # emb_ref: (TR, D) lane/sublane-dense; pe_ref: (1, 1, D) -> (1, D) broadcast over rows.
    out_ref[...] = (emb_ref[...].astype(jnp.float32) * scale + pe_ref[0]).astype(out_ref.dtype)


# --------------------------------------------------------------------------------------
# Tiling heuristics
# --------------------------------------------------------------------------------------

def _default_vmem_budget() -> int:
    """Double-buffered working-set budget: ~12 MiB on v5e (16 MiB scoped default),
    ~24 MiB on v6e/v7x (32 MiB scoped default).  An explicit vmem_limit_bytes with
    headroom is passed alongside so the compiler actually grants it."""
    try:
        kind = jax.devices()[0].device_kind.lower()
    except Exception:  # pragma: no cover
        kind = ""
    if "v5 lite" in kind or "v5e" in kind or "v5lite" in kind:
        return 12 * 1024 * 1024
    return 24 * 1024 * 1024


def _pick_prefill_tiles(seq_len, batch, dim, itemsize, budget):
    """Returns (block_seq, block_batch)."""
    pe_row_bytes = dim * 4
    # Double-buffered emb tile + out tile + pe tile, per seq row (full batch).
    row_bytes = 2 * (2 * batch * dim * itemsize + pe_row_bytes)
    if row_bytes <= budget:
        ts = max(1, budget // row_bytes)
        ts = min(ts, seq_len)
        n_tiles = _cdiv(seq_len, ts)
        # v7x has 2 TensorCores: make sure a 'parallel' axis has >1 step when each tile
        # is still big enough (>2 MiB) to amortize the ~0.35us per-step overhead.
        if n_tiles == 1 and seq_len >= 2 and row_bytes * ts > (2 << 20):
            n_tiles = 2
        ts = _cdiv(seq_len, n_tiles)            # balanced tiles, no sliver final step
        return int(ts), int(batch)
    # A single seq row exceeds the budget (huge batch*dim): tile batch instead.
    per_batch_bytes = 2 * 2 * dim * itemsize
    tb = max(1, (budget - 2 * pe_row_bytes) // per_batch_bytes)
    tb = min(tb, batch)
    tb = _cdiv(batch, _cdiv(batch, tb))          # balanced
    if tb < batch and batch >= 8:
        tb = max(8, (tb // 8) * 8)               # keep sublanes dense when actually tiling batch
    return 1, int(tb)


def _pick_decode_rows(rows, dim, itemsize, budget):
    per_row = 2 * 2 * dim * itemsize             # double-buffered emb + out row
    br = max(1, (budget - 2 * dim * 4) // per_row)
    br = min(br, rows)
    n_tiles = _cdiv(rows, br)
    if n_tiles == 1 and rows >= 16 and per_row * br > (2 << 20):
        n_tiles = 2                               # feed both v7x TensorCores
    br = _cdiv(rows, n_tiles)
    if br < rows:
        br = min(rows, ((br + 7) // 8) * 8)       # sublane-dense row tiles
    return int(br)


# --------------------------------------------------------------------------------------
# Wrapper
# --------------------------------------------------------------------------------------

def positional_encoding(emb, pe, dim, step=None, *,
                        block_seq=None, block_batch=None, block_rows=None,
                        vmem_budget_bytes=None,
                        min_pallas_elements: int = 16384,
                        alias_emb: bool = False):
    """emb: (seq_len, batch, dim); pe: (max_len, 1, dim) float32.

    If alias_emb=True the output reuses emb's buffer (only beneficial when the caller
    donates emb, e.g. jax.jit(..., donate_argnums=...)); otherwise leave it False."""
    seq_len, batch, d = emb.shape
    assert d == dim
    scale = math.sqrt(dim)

    # Fast path: for tiny work (true decode steps, short prompts) a single fused XLA
    # elementwise op beats pallas_call + pipeline fixed overhead.
    if seq_len * batch * dim <= min_pallas_elements:
        if step is None:
            return (emb.astype(jnp.float32) * scale + pe[:seq_len]).astype(emb.dtype)
        pe_row = jax.lax.dynamic_slice_in_dim(pe, step, 1, axis=0)   # (1, 1, dim)
        return (emb.astype(jnp.float32) * scale + pe_row).astype(emb.dtype)

    if vmem_budget_bytes is None:
        vmem_budget_bytes = _default_vmem_budget()
    vmem_limit = int(vmem_budget_bytes) + (4 << 20)                  # grant budget + headroom
    itemsize = emb.dtype.itemsize

    if step is None:
        # ---------------------------- prefill: emb + pe[:seq_len] ----------------------
        ts, tb = _pick_prefill_tiles(seq_len, batch, dim, itemsize, vmem_budget_bytes)
        if block_seq is not None:
            ts = max(1, min(int(block_seq), seq_len))
        if block_batch is not None:
            tb = max(1, min(int(block_batch), batch))
        grid = (_cdiv(seq_len, ts), _cdiv(batch, tb))

        kernel = functools.partial(_prefill_kernel, scale=scale)
        bytes_accessed = 2 * seq_len * batch * dim * itemsize + seq_len * dim * 4

        return pl.pallas_call(
            kernel,
            out_shape=jax.ShapeDtypeStruct((seq_len, batch, dim), emb.dtype),
            grid=grid,
            in_specs=[
                pl.BlockSpec((ts, tb, dim), lambda i, j: (i, j, 0)),
                # Whole pe table passed; index_map does the pe[:seq_len] tile slicing,
                # keeping pe traffic at 1/batch of emb traffic.
                pl.BlockSpec((ts, 1, dim), lambda i, j: (i, 0, 0)),
            ],
            out_specs=pl.BlockSpec((ts, tb, dim), lambda i, j: (i, j, 0)),
            input_output_aliases=({0: 0} if alias_emb else {}),
            compiler_params=pltpu.CompilerParams(
                dimension_semantics=("parallel", "parallel"),
                vmem_limit_bytes=vmem_limit),
            cost_estimate=pl.CostEstimate(
                flops=2 * seq_len * batch * dim,
                transcendentals=0,
                bytes_accessed=bytes_accessed),
        )(emb, pe)

    # ------------------------------- decode: emb + pe[step] ----------------------------
    rows = seq_len * batch
    emb2 = emb.reshape(rows, dim)                 # free row-major reshape, lane/sublane dense
    br = _pick_decode_rows(rows, dim, itemsize, vmem_budget_bytes)
    if block_rows is not None:
        br = max(1, min(int(block_rows), rows))
    grid = (_cdiv(rows, br),)

    step_arr = jnp.asarray(step, dtype=jnp.int32).reshape((1,))
    kernel = functools.partial(_decode_kernel, scale=scale)
    bytes_accessed = 2 * rows * dim * itemsize + dim * 4

    out2 = pl.pallas_call(
        kernel,
        out_shape=jax.ShapeDtypeStruct((rows, dim), emb.dtype),
        grid_spec=pltpu.PrefetchScalarGridSpec(
            num_scalar_prefetch=1,                 # `step` lands in SMEM, drives pe index_map
            grid=grid,
            in_specs=[
                pl.BlockSpec((br, dim), lambda i, step_ref: (i, 0)),
                pl.BlockSpec((1, 1, dim), lambda i, step_ref: (step_ref[0], 0, 0)),
            ],
            out_specs=pl.BlockSpec((br, dim), lambda i, step_ref: (i, 0)),
        ),
        input_output_aliases=({1: 0} if alias_emb else {}),
        compiler_params=pltpu.CompilerParams(
            dimension_semantics=("parallel",),
            vmem_limit_bytes=vmem_limit),
        cost_estimate=pl.CostEstimate(
            flops=2 * rows * dim,
            transcendentals=0,
            bytes_accessed=bytes_accessed),
    )(step_arr, emb2, pe)
    return out2.reshape(seq_len, batch, dim)


# --------------------------------------------------------------------------------------
# Demo / correctness check
# --------------------------------------------------------------------------------------

if __name__ == "__main__":
    seq_len, batch, dim, max_len = 16, 2, 32, 64
    key = jax.random.PRNGKey(0)
    emb = jax.random.normal(key, (seq_len, batch, dim), dtype=jnp.float32)
    pe = build_positional_table(max_len, dim)

    scale = math.sqrt(dim)
    ref_none = emb * scale + pe[:seq_len]          # step=None path
    step = 5
    ref_step = emb * scale + pe[step]              # decode path: pe[step] is (1, dim)

    # Prefill path; min_pallas_elements=0 forces the Pallas kernel even at demo size,
    # block_seq=4 forces a multi-step grid to exercise the pipeline.
    out_none = jax.block_until_ready(
        positional_encoding(emb, pe, dim, block_seq=4, min_pallas_elements=0))
    # Decode path: scalar-prefetched step, lane-dense (seq*batch, dim) blocking.
    out_step = jax.block_until_ready(
        positional_encoding(emb, pe, dim, step=step, block_rows=8, min_pallas_elements=0))
    # Fast path (tiny workload bypass) should match too.
    out_fast = jax.block_until_ready(positional_encoding(emb, pe, dim))

    assert out_none.shape == (seq_len, batch, dim)
    assert out_step.shape == (seq_len, batch, dim)
    assert jnp.allclose(out_none, ref_none, atol=1e-5, rtol=1e-5)
    assert jnp.allclose(out_step, ref_step, atol=1e-5, rtol=1e-5)
    assert jnp.allclose(out_fast, ref_none, atol=1e-5, rtol=1e-5)

    print("KERNEL_OK")
</pallas_src>

<mosaic_0001>
module attributes {stable_mosaic.version = 11 : i64} {
  func.func @_prefill_kernel(%arg0: i32, %arg1: i32, %arg2: memref<4x2x32xf32, #tpu.memory_space<vmem>>, %arg3: memref<4x1x32xf32, #tpu.memory_space<vmem>>, %arg4: memref<4x2x32xf32, #tpu.memory_space<vmem>>) attributes {dimension_semantics = [#tpu.dimension_semantics<parallel>, #tpu.dimension_semantics<parallel>], iteration_bounds = array<i64: 4, 1>, scalar_prefetch = 0 : i64, scratch_operands = 0 : i64, tpu.core_type = #tpu.core_type<tc>, window_params = [{transform_indices = @transform_0, window_bounds = array<i64: 4, 2, 32>}, {transform_indices = @transform_1, window_bounds = array<i64: 4, 1, 32>}, {transform_indices = @transform_2, window_bounds = array<i64: 4, 2, 32>}]} {
    %c0 = arith.constant 0 : index
    %c0_0 = arith.constant 0 : index
    %c0_1 = arith.constant 0 : index
    %0 = vector.load %arg2[%c0, %c0_0, %c0_1] : memref<4x2x32xf32, #tpu.memory_space<vmem>>, vector<4x2x32xf32>
    %cst = arith.constant 5.65685415 : f32
    %1 = vector.broadcast %cst : f32 to vector<4x2x32xf32>
    %2 = arith.mulf %0, %1 : vector<4x2x32xf32>
    %c0_2 = arith.constant 0 : index
    %c0_3 = arith.constant 0 : index
    %c0_4 = arith.constant 0 : index
    %3 = vector.load %arg3[%c0_2, %c0_3, %c0_4] : memref<4x1x32xf32, #tpu.memory_space<vmem>>, vector<4x1x32xf32>
    %4 = vector.broadcast %3 : vector<4x1x32xf32> to vector<4x2x32xf32>
    %5 = arith.addf %2, %4 : vector<4x2x32xf32>
    %c0_5 = arith.constant 0 : index
    %c0_6 = arith.constant 0 : index
    %c0_7 = arith.constant 0 : index
    %6 = vector.load %arg4[%c0_5, %c0_6, %c0_7] : memref<4x2x32xf32, #tpu.memory_space<vmem>>, vector<4x2x32xf32>
    tpu.vector_store %arg4[%c0_5, %c0_6, %c0_7], %5 {strides = array<i32>} : memref<4x2x32xf32, #tpu.memory_space<vmem>>, vector<4x2x32xf32>,
    return
  }
  func.func @transform_0(%arg0: i32, %arg1: i32) -> (i32, i32, i32) {
    %c0_i32 = arith.constant 0 : i32
    %c0_i32_0 = arith.constant 0 : i32
    return %arg0, %arg1, %c0_i32 : i32, i32, i32
  }
  func.func @transform_1(%arg0: i32, %arg1: i32) -> (i32, i32, i32) {
    %c0_i32 = arith.constant 0 : i32
    %c0_i32_0 = arith.constant 0 : i32
    %c0_i32_1 = arith.constant 0 : i32
    return %arg0, %c0_i32, %c0_i32_0 : i32, i32, i32
  }
  func.func @transform_2(%arg0: i32, %arg1: i32) -> (i32, i32, i32) {
    %c0_i32 = arith.constant 0 : i32
    %c0_i32_0 = arith.constant 0 : i32
    return %arg0, %arg1, %c0_i32 : i32, i32, i32
  }
}

</mosaic_0001>

<llo_original>
// kernel: tpu_custom_call.1
$region0: #{tpu_custom_call.1}
  #allocation0 [shape = 'u32[]', space=smem, size = 0x4, offset = 0x4, fixed_abs, tag = 'smem constant byte address 0x4 - core index']
  #allocation1 [shape = 'u32[144,128]{1,0:T(1,128)}', space=vmem, size = 0x12000, scoped, tag = 'internal scratch']
  %s0 = inlined_call_operand.vmem [shape: f32[16,2,32], index: 0, kind: input, shape index: {}]
  %s1 = inlined_call_operand.vmem [shape: f32[64,1,32], index: 1, kind: input, shape index: {}]
  %s2 = inlined_call_operand.hbm [shape: f32[16,2,32], index: 2, kind: output, shape index: {}]
  %s3 = sld [smem:[#allocation0]]
  $region41: #{tpu_custom_call.1} parent=0
    _
  %s5 = ssub.s32 1, %s3
  %s6 = scalar_select 0, %s5, %s3
  $region1: #{tpu_custom_call.1} parent=0
    #allocation2 [shape = 'u8[8192]{0}', space=vmem, size = 0x2000, scoped, tag = 'output window, operand 0']
    #allocation3 [shape = 's32[2]{0}', space=sflag, size = 0x8, scoped, tag = 'scoped memory for tpu_custom_call.1']
    %7 = vsyncpa [#allocation3], 0
    %s8 = scalar_lea.sflag [#allocation3], 1
    %9 = vsyncpa %s8, 0
    loop: start=0, step=1, limit=6
    $region2: #{tpu_custom_call.1} parent=1 // loop_pre_header
      _
    $region3: #{tpu_custom_call.1} parent=1 // loop_header
      %s11 = sphi 0, %s15
      %p12 = scmp.ge.s32.totalorder %s11, 6
      %s18 = sphi 0, %s30
      %s19 = sphi 0, %s26
      %s20 = sphi 0, %s18
      %s21 = sphi 0, %s19
      %s22 = sphi 0, %s20
      %s23 = sphi 0, %s21
      %s35 = sphi 0, %s37
      %s38 = sphi 0, %s35
      %s39 = sphi 0, %s38
      %s55 = sphi 0, %s39
      %s61 = sphi 0, %s63
      %s64 = sphi 0, %s61
      %s65 = sphi 0, %s64
      %s81 = sphi 0, %s65
      %s89 = sphi 0, %s91
      %s92 = sphi 0, %s89
      %s93 = sphi 0, %s92
      %s109 = sphi 0, %s93
    $region4: #{tpu_custom_call.1} parent=1 // loop_header_branch
      %14 = sbr.rel (%p12) target = $region8
    $region5: #{tpu_custom_call.1} parent=1 // loop_body
      %s16 = ssub.s32 %s11, 1
      %s17 = ssub.s32 %s11, 2
      %s24 = sadd.s32 1, %s19
      %p25 = scmp.ge.s32.totalorder %s24, 1
      %s26 = scalar_select %p25, 0, %s24
      %s27 = sadd.s32 1, %s18
      %s28 = scalar_select %p25, %s27, %s18
      %p29 = scmp.ge.s32.totalorder %s28, 4
      %s30 = scalar_select %p29, 0, %s28
      %s31 = ssub.s32 %s18, %s30
      %s32 = ssub.s32 %s19, %s26
      %s33 = sor.u32 %s31, %s32
      %p34 = scmp.eq.s32.totalorder %s33, 0
      %s36 = sadd.s32 %s35, 1
      %s37 = scalar_select %p34, %s35, %s36
      %p40 = pneg %p34
      %p41 = scmp.eq.s32.totalorder %s11, 3
      %p42 = por %p40, %p41
      %p43 = scmp.ne.s32.totalorder %s35, %s38
      %p44 = scmp.eq.s32.totalorder %s11, 0
      %p45 = por %p43, %p44
      %p46 = scmp.ne.s32.totalorder %s35, %s38
      %p47 = scmp.eq.s32.totalorder %s16, 3
      %p48 = por %p46, %p47
      %p49 = scmp.ne.s32.totalorder %s38, %s39
      %p50 = scmp.eq.s32.totalorder %s16, 0
      %p51 = por %p49, %p50
      %p52 = scmp.ne.s32.totalorder %s38, %s39
      %p53 = scmp.eq.s32.totalorder %s17, 3
      %p54 = por %p52, %p53
      %p56 = scmp.ne.s32.totalorder %s39, %s55
      %p57 = scmp.eq.s32.totalorder %s17, 0
      %p58 = por %p56, %p57
      %s59 = ssub.s32 %s18, %s30
      %p60 = scmp.eq.s32.totalorder %s59, 0
      %s62 = sadd.s32 %s61, 1
      %s63 = scalar_select %p60, %s61, %s62
      %p66 = pneg %p60
      %p67 = scmp.eq.s32.totalorder %s11, 3
      %p68 = por %p66, %p67
      %p69 = scmp.ne.s32.totalorder %s61, %s64
      %p70 = scmp.eq.s32.totalorder %s11, 0
      %p71 = por %p69, %p70
      %p72 = scmp.ne.s32.totalorder %s61, %s64
      %p73 = scmp.eq.s32.totalorder %s16, 3
      %p74 = por %p72, %p73
      %p75 = scmp.ne.s32.totalorder %s64, %s65
      %p76 = scmp.eq.s32.totalorder %s16, 0
      %p77 = por %p75, %p76
      %p78 = scmp.ne.s32.totalorder %s64, %s65
      %p79 = scmp.eq.s32.totalorder %s17, 3
      %p80 = por %p78, %p79
      %p82 = scmp.ne.s32.totalorder %s65, %s81
      %p83 = scmp.eq.s32.totalorder %s17, 0
      %p84 = por %p82, %p83
      %s85 = ssub.s32 %s18, %s30
      %s86 = ssub.s32 %s19, %s26
      %s87 = sor.u32 %s85, %s86
      %p88 = scmp.eq.s32.totalorder %s87, 0
      %s90 = sadd.s32 %s89, 1
      %s91 = scalar_select %p88, %s89, %s90
      %p94 = pneg %p88
      %p95 = scmp.eq.s32.totalorder %s11, 3
      %p96 = por %p94, %p95
      %p97 = scmp.ne.s32.totalorder %s89, %s92
      %p98 = scmp.eq.s32.totalorder %s11, 0
      %p99 = por %p97, %p98
      %p100 = scmp.ne.s32.totalorder %s89, %s92
      %p101 = scmp.eq.s32.totalorder %s16, 3
      %p102 = por %p100, %p101
      %p103 = scmp.ne.s32.totalorder %s92, %s93
      %p104 = scmp.eq.s32.totalorder %s16, 0
      %p105 = por %p103, %p104
      %p106 = scmp.ne.s32.totalorder %s92, %s93
      %p107 = scmp.eq.s32.totalorder %s17, 3
      %p108 = por %p106, %p107
      %p110 = scmp.ne.s32.totalorder %s93, %s109
      %p111 = scmp.eq.s32.totalorder %s17, 0
      %p112 = por %p110, %p111
      %p113 = scmp.le.s32.totalorder 1, %s11
      %p114 = scmp.lt.s32.totalorder %s11, 5
      %p115 = pnand %p113, %p114
      %p116 = pneg %p115
      // Predicated region
      $region9: #{tpu_custom_call.1} parent=5 // pred_check
        _
      $region10: #{tpu_custom_call.1} parent=5 // pred_check_branch
        %118 = sbr.rel (%p115) target = $region12
      $region11: #{tpu_custom_call.1} parent=5 // pred_region
        %s119 = ssub.s32 %s11, 1
      $region12: #{tpu_custom_call.1} parent=5 // pred_fallthru
        _
      %p120 = scmp.lt.s32.totalorder %s11, 4
      // Predicated region
      $region13: #{tpu_custom_call.1} parent=5 // pred_check
        %p121 = pneg %p120
      $region14: #{tpu_custom_call.1} parent=5 // pred_check_branch
        %123 = sbr.rel (%p121) target = $region16
      $region15: #{tpu_custom_call.1} parent=5 // pred_region
        // Predicated region
        $region17: #{tpu_custom_call.1} parent=15 // pred_check
          %p124 = pneg %p45
        $region18: #{tpu_custom_call.1} parent=15 // pred_check_branch
          %126 = sbr.rel (%p124) target = $region20
        $region19: #{tpu_custom_call.1} parent=15 // pred_region
          %s127 = smul.u32 4, %s18
          %p128 = scmp.lt.s32.totalorder %s127, 15
          %s129 = scalar_select %p128, %s127, 15
          %p130 = scmp.lt.s32.totalorder %s19, 0
          %s131 = scalar_select %p130, %s19, 0
          %s132 = sadd.s32 %s131, %s129
          %s133 = smul.addr %s132, 2
          %s134 = scalar_lea.vmem %s0, %s133
          %s135 = smul.u32 4, %s18
        $region20: #{tpu_custom_call.1} parent=15 // pred_fallthru
          _
        // Predicated region
        $region21: #{tpu_custom_call.1} parent=15 // pred_check
          %p136 = pneg %p71
        $region22: #{tpu_custom_call.1} parent=15 // pred_check_branch
          %138 = sbr.rel (%p136) target = $region24
        $region23: #{tpu_custom_call.1} parent=15 // pred_region
          %s139 = smul.u32 4, %s18
          %p140 = scmp.lt.s32.totalorder %s139, 63
          %s141 = scalar_select %p140, %s139, 63
          %s142 = scalar_lea.vmem %s1, %s141
          %s143 = smul.u32 4, %s18
        $region24: #{tpu_custom_call.1} parent=15 // pred_fallthru
          _
      $region16: #{tpu_custom_call.1} parent=5 // pred_fallthru
        _
      %p144 = scmp.le.s32.totalorder 1, %s11
      %p145 = scmp.lt.s32.totalorder %s11, 5
      %p146 = pnand %p144, %p145
      %p147 = pneg %p146
      // Predicated region
      $region25: #{tpu_custom_call.1} parent=5 // pred_check
        _
      $region26: #{tpu_custom_call.1} parent=5 // pred_check_branch
        %149 = sbr.rel (%p146) target = $region28
      $region27: #{tpu_custom_call.1} parent=5 // pred_region
        %s150 = ssub.s32 %s11, 1
        %s151 = smul.u32 4, %s20
        %p152 = scmp.lt.s32.totalorder %s151, 15
        %s153 = scalar_select %p152, %s151, 15
        %p154 = scmp.lt.s32.totalorder %s21, 0
        %s155 = scalar_select %p154, %s21, 0
        %s156 = sadd.s32 %s155, %s153
        %s157 = smul.addr %s156, 2
        %s158 = scalar_lea.vmem %s0, %s157
        %p159 = pneg %p51
        %p160 = pneg %p48
        %s161 = smul.u32 4, %s20
        %p162 = scmp.lt.s32.totalorder %s161, 63
        %s163 = scalar_select %p162, %s161, 63
        %s164 = scalar_lea.vmem %s1, %s163
        %p165 = pneg %p77
        %p166 = pneg %p74
        %p167 = pneg %p105
        %p168 = pneg %p102
        %s169 = sand.u32 %s92, 1
        %s170 = scalar_lea.sflag [#allocation3], %s169
        %s171 = sand.u32 %s92, 1
        %s172 = smul.addr %s171, 8
        %s173 = scalar_lea.vmem [#allocation2], %s172
        %s174 = smul.u32 4, %s20
        %p175 = scmp.lt.s32.totalorder %s174, 15
        %s176 = scalar_select %p175, %s174, 15
        %p177 = scmp.lt.s32.totalorder %s21, 0
        %s178 = scalar_select %p177, %s21, 0
        %s179 = sadd.s32 %s178, %s176
        %s180 = smul.addr %s179, 2
        %s181 = scalar_lea.vmem %s0, %s180
        %s182 = smul.u32 4, %s20
        %s183 = smul.u32 4, %s20
        %p184 = scmp.lt.s32.totalorder %s183, 63
        %s185 = scalar_select %p184, %s183, 63
        %s186 = scalar_lea.vmem %s1, %s185
        %s187 = smul.u32 4, %s20
        %s188 = smul.u32 4, %s20
        %v189 = vld [vmem:[%s181] sm:$0x3]
        %v190 = vld [vmem:[%s181 + $0x2] sm:$0x3]
        %v191 = vld [vmem:[%s181 + $0x4] sm:$0x3]
        %v192 = vld [vmem:[%s181 + $0x6] sm:$0x3]
        %v193 = vmul.f32 %v189, 5.656854
        %v194 = vmul.f32 %v190, 5.656854
        %v195 = vmul.f32 %v191, 5.656854
        %v196 = vmul.f32 %v192, 5.656854
        %v197 = vld [vmem:[%s186] sm:$0x1]
        %v198 = vld [vmem:[%s186 + $0x1] sm:$0x1]
        %v199 = vld [vmem:[%s186 + $0x2] sm:$0x1]
        %v200 = vld [vmem:[%s186 + $0x3] sm:$0x1]
        %v205 = vlaneseq
        %v206 = vshrl.u32 %v205, 7
        %v207 = vsub.s32 0, %v206
        %v208 = vrot.slane %v197, %v207
        %v209 = vlaneseq
        %v210 = vshrl.u32 %v209, 7
        %v211 = vsub.s32 0, %v210
        %v212 = vrot.slane %v198, %v211
        %v213 = vlaneseq
        %v214 = vshrl.u32 %v213, 7
        %v215 = vsub.s32 0, %v214
        %v216 = vrot.slane %v199, %v215
        %v217 = vlaneseq
        %v218 = vshrl.u32 %v217, 7
        %v219 = vsub.s32 0, %v218
        %v220 = vrot.slane %v200, %v219
        %v225 = vadd.f32 %v193, %v208
        %v226 = vadd.f32 %v194, %v212
        %v227 = vadd.f32 %v195, %v216
        %v228 = vadd.f32 %v196, %v220
        %vm229 = vcmask 254976
        %230 = vst.msk [vmem:[%s173] sm:$0x3] %vm229, %v225
        %231 = vst.msk [vmem:[%s173 + $0x2] sm:$0x3] %vm229, %v226
        %232 = vst.msk [vmem:[%s173 + $0x4] sm:$0x3] %vm229, %v227
        %233 = vst.msk [vmem:[%s173 + $0x6] sm:$0x3] %vm229, %v228
        %s234 = sand.u32 %s92, 1
        %s235 = scalar_lea.sflag [#allocation3], %s234
        %s236 = sand.u32 %s92, 1
        %s237 = smul.addr %s236, 8
        %s238 = scalar_lea.vmem [#allocation2], %s237
        // Predicated region
        $region29: #{tpu_custom_call.1} parent=27 // pred_check
          %p239 = pneg %p102
        $region30: #{tpu_custom_call.1} parent=27 // pred_check_branch
          %241 = sbr.rel (%p239) target = $region32
        $region31: #{tpu_custom_call.1} parent=27 // pred_region
          %s242 = smul.u32 4, %s20
          %s244 = ssub.s32 128, 128
          %245 = vsyncadd %s235, %s244
          %s246 = sadd.s32 %s21, %s242
          %s247 = smul.addr %s246, 32
          %s248 = scalar_lea.hbm %s2, %s247
          %s249 = sshll.u32 %s238, 4
          %s250 = int_to_ptr.vmem [resolvable:$true] %s249
          %255 = dma.vmem_to_hbm [thread:$0]  %s250, 128, %s248, %s235, 32, 32, 2
        $region32: #{tpu_custom_call.1} parent=27 // pred_fallthru
          _
      $region28: #{tpu_custom_call.1} parent=5 // pred_fallthru
        _
      %p256 = scmp.le.s32.totalorder 2, %s11
      // Predicated region
      $region33: #{tpu_custom_call.1} parent=5 // pred_check
        %p257 = pneg %p256
      $region34: #{tpu_custom_call.1} parent=5 // pred_check_branch
        %259 = sbr.rel (%p257) target = $region36
      $region35: #{tpu_custom_call.1} parent=5 // pred_region
        %s260 = ssub.s32 %s11, 2
        // Predicated region
        $region37: #{tpu_custom_call.1} parent=35 // pred_check
          %p261 = pneg %p108
        $region38: #{tpu_custom_call.1} parent=35 // pred_check_branch
          %263 = sbr.rel (%p261) target = $region40
        $region39: #{tpu_custom_call.1} parent=35 // pred_region
          %s264 = sand.u32 %s93, 1
          %s265 = scalar_lea.sflag [#allocation3], %s264
          %s266 = sand.u32 %s93, 1
          %s267 = smul.addr %s266, 8
          %s268 = scalar_lea.vmem [#allocation2], %s267
          %269 = dma.done %s265, 128
        $region40: #{tpu_custom_call.1} parent=35 // pred_fallthru
          _
      $region36: #{tpu_custom_call.1} parent=5 // pred_fallthru
        _
    $region6: #{tpu_custom_call.1} parent=1 // loop_footer
      %s15 = sadd.s32 1, %s11
    $region7: #{tpu_custom_call.1} parent=1 // loop_footer_branch
      %10 = sbr.rel target = $region3
    $region8: #{tpu_custom_call.1} parent=1 // loop_exit
      _
    %270 = vsyncpa [#allocation3], 1
    %s271 = scalar_lea.sflag [#allocation3], 1
    %272 = vsyncpa %s271, 1

</llo_original>
